<compile_context>
chip_gen: v7x
topology: tpu7x:2x2x1
jax: 0.10.0
libtpu: 0.0.40
codegen_flags: <defaults>
</compile_context>

<pallas_src>
import math

import jax
import jax.numpy as jnp
from jax.experimental import pallas as pl
from jax.experimental.pallas import tpu as pltpu


def _copy_kernel(x_ref, o_ref):
    # Pure pass-through of the current VMEM tile.
    o_ref[...] = x_ref[...]


def _vmem_capacity_bytes():
    """Per-generation VMEM capacity, with a conservative (v7x-sized) fallback."""
    try:
        return int(pltpu.get_tpu_info().vmem_capacity_bytes)
    except Exception:
        return 64 * 1024 * 1024


def _cost_estimate(total_bytes):
    """Identity copy: 0 flops, pure HBM read + write."""
    try:
        return pl.CostEstimate(flops=0, transcendentals=0,
                               bytes_accessed=2 * total_bytes)
    except Exception:
        return None


def _dtype_sublane(itemsize):
    """Native packed sublane multiple: 8 (f32), 16 (bf16), 32 (int8/fp8)."""
    bits = itemsize * 8
    return 8 * max(1, 32 // max(bits, 1))


def _pick_row_tiling(rows, row_bytes, sublane, block_bytes):
    """Choose (row_tile, num_blocks) for the 2-D lane-dense copy.

    Prefers tiles that (a) are multiples of the dtype's packed sublane count,
    (b) divide `rows` exactly (uniform, unmasked blocks), (c) give >=2 and
    preferably an even number of grid steps (so a v7x 2-core split balances),
    and (d) stay within the per-block byte budget.
    """
    if rows <= sublane:
        return rows, 1                       # tiny: single full-extent block
    budget_rows = max(sublane, block_bytes // row_bytes)
    limit = min(rows, budget_rows)
    best_any = None
    best_even = None
    for t in range(sublane, limit + 1, sublane):
        if rows % t:
            continue
        nb = rows // t
        if nb < 2:
            continue                         # prefer a real multi-step grid
        best_any = t                         # ascending loop -> largest wins
        if nb % 2 == 0:
            best_even = t
    tile = best_even if best_even is not None else best_any
    if tile is not None:
        return tile, rows // tile
    # No uniform sublane-aligned tiling exists: sublane-aligned tile with a
    # masked trailing partial block (correct, slightly less efficient).
    tile = max(sublane, (min(budget_rows, rows) // sublane) * sublane)
    if tile >= rows:
        return rows, 1
    return tile, pl.cdiv(rows, tile)


# Memoized: flipped off the first time CORE_PARALLEL is rejected by the
# chip / toolchain, so later calls skip the failed compile attempt.
_CORE_SPLIT_OK = [True]


def _grid_copy(build_call, num_blocks):
    """Invoke build_call(dim_semantics); try a true 2-TC core split first."""
    core_sem = getattr(pltpu, "CORE_PARALLEL", None)
    if num_blocks >= 2 and core_sem is not None and _CORE_SPLIT_OK[0]:
        try:
            return build_call(core_sem)
        except Exception:
            _CORE_SPLIT_OK[0] = False        # single-core chip / old toolchain
    return build_call(getattr(pltpu, "PARALLEL", "parallel"))


def _odd_total_copy(x, total, itemsize, block_bytes, vmem_limit, cost):
    """Copy path for element counts not divisible by 128.

    Small inputs use a single whole-array block.  Larger ones stream through a
    chunked 1-D copy (chunk % 1024 == 0); the trailing partial block is handled
    by Pallas' masked store, so only one chunk is ever resident in VMEM.
    """
    dtype = x.dtype
    flat = x.reshape(total)

    if total * itemsize <= 2 * 1024 * 1024:
        out = pl.pallas_call(
            _copy_kernel,
            out_shape=jax.ShapeDtypeStruct((total,), dtype),
            compiler_params=pltpu.CompilerParams(vmem_limit_bytes=vmem_limit),
            cost_estimate=cost,
        )(flat)
        return out.reshape(x.shape)

    chunk = max(1024, min((block_bytes // itemsize) // 1024 * 1024,
                          (total // 1024) * 1024))
    num_blocks = pl.cdiv(total, chunk)

    def build_call(dim_sem):
        return pl.pallas_call(
            _copy_kernel,
            out_shape=jax.ShapeDtypeStruct((total,), dtype),
            grid=(num_blocks,),
            in_specs=[pl.BlockSpec((chunk,), lambda i: (i,))],
            out_specs=pl.BlockSpec((chunk,), lambda i: (i,)),
            compiler_params=pltpu.CompilerParams(
                dimension_semantics=(dim_sem,),
                vmem_limit_bytes=vmem_limit),
            cost_estimate=cost,
        )(flat)

    out = _grid_copy(build_call, num_blocks)
    return out.reshape(x.shape)


def _pallas_identity_copy(x, *, block_bytes=None):
    """Materialized identity copy of `x` through a Pallas TPU kernel."""
    orig_shape = x.shape
    dtype = x.dtype
    itemsize = jnp.dtype(dtype).itemsize
    total = math.prod(orig_shape) if orig_shape else 1

    if total == 0:
        return x

    # ---- Per-generation byte budgets. ----
    vmem_cap = _vmem_capacity_bytes()         # 64 MiB (v7x) / 128 MiB (v5e,v6e)
    if block_bytes is None:
        # Larger blocks on 128 MiB parts (fewer grid steps, longer DMA bursts);
        # 8 MiB on v7x so in+out double-buffered fits its 64 MiB VMEM.
        block_bytes = (24 * 1024 * 1024 if vmem_cap >= 128 * 1024 * 1024
                       else 8 * 1024 * 1024)
    block_bytes = max(32 * 1024, block_bytes)
    # Scoped VMEM: 4 live buffers (in+out, double-buffered) + headroom, always
    # >= 16 MiB under physical capacity.
    vmem_limit = max(32 * 1024 * 1024,
                     min(vmem_cap - 16 * 1024 * 1024,
                         4 * block_bytes + 16 * 1024 * 1024))
    cost = _cost_estimate(total * itemsize)

    if total % 128 != 0:
        return _odd_total_copy(x, total, itemsize, block_bytes, vmem_limit, cost)

    # ---- Lane-dense, contiguous 2-D view: (rows, cols), cols % 128 == 0. ----
    cols = 128
    while cols * 2 <= 1024 and total % (cols * 2) == 0:
        cols *= 2
    rows = total // cols
    x2d = x.reshape(rows, cols)

    sublane = _dtype_sublane(itemsize)
    row_tile, num_blocks = _pick_row_tiling(rows, cols * itemsize, sublane,
                                            block_bytes)

    def build_call(dim_sem):
        return pl.pallas_call(
            _copy_kernel,
            out_shape=jax.ShapeDtypeStruct((rows, cols), dtype),
            grid=(num_blocks,),
            in_specs=[pl.BlockSpec((row_tile, cols), lambda i: (i, 0))],
            out_specs=pl.BlockSpec((row_tile, cols), lambda i: (i, 0)),
            compiler_params=pltpu.CompilerParams(
                dimension_semantics=(dim_sem,),
                vmem_limit_bytes=vmem_limit),
            cost_estimate=cost,
        )(x2d)

    out2d = _grid_copy(build_call, num_blocks)
    return out2d.reshape(orig_shape)


def ft_forward(X, states=None, *, force_copy=False, donated=False):
    """FT.forward — identity.

    Default is a zero-cost pass-through (no kernel, no HBM traffic), which is
    the optimal implementation of an identity.  `force_copy=True` returns a
    freshly materialized copy via the Pallas kernel.  `donated=True` means the
    caller donates X's buffer, in which case even the copy is elided (an
    aliased identity copy would read and rewrite the same HBM bytes for
    nothing).  `states` is accepted for signature parity and ignored.
    """
    if not force_copy or donated:
        return X
    return _pallas_identity_copy(X)


if __name__ == "__main__":
    key = jax.random.PRNGKey(0)
    keys = jax.random.split(key, 4)

    # Small NCHW input consistent with the module's forward signature.
    x = jax.random.normal(keys[0], (2, 4, 16, 16), dtype=jnp.float32)

    # Default path: zero-cost identity pass-through.
    y = jax.block_until_ready(ft_forward(x))
    assert y.shape == x.shape and y.dtype == x.dtype
    assert bool(jnp.array_equal(y, x))

    # Pallas kernel path: materialized identity copy (single contiguous block).
    y_copy = jax.block_until_ready(ft_forward(x, force_copy=True))
    assert y_copy.shape == x.shape and y_copy.dtype == x.dtype
    assert bool(jnp.array_equal(y_copy, x))

    # Tiled / core-split path: small block_bytes forces 8 uniform (8, 1024)
    # full-lane-width row tiles (even step count -> balanced on v7x).
    x_f32 = jax.random.normal(keys[1], (8, 8, 32, 32), jnp.float32)
    y_f32 = jax.block_until_ready(
        _pallas_identity_copy(x_f32, block_bytes=32 * 1024))
    assert bool(jnp.array_equal(y_f32, x_f32))

    # bf16 path: row tiles rounded to the packed-sublane multiple (16).
    x_bf16 = jax.random.normal(keys[2], (8, 16, 32, 32),
                               jnp.float32).astype(jnp.bfloat16)
    y_bf16 = jax.block_until_ready(
        _pallas_identity_copy(x_bf16, block_bytes=64 * 1024))
    assert y_bf16.dtype == jnp.bfloat16
    assert bool(jnp.array_equal(y_bf16, x_bf16))

    # Odd element count, large: chunked 1-D copy with a masked trailing block
    # (no whole-array VMEM residency).
    x_odd = jax.random.normal(keys[3], (3, 200003), jnp.float32)
    y_odd = jax.block_until_ready(
        _pallas_identity_copy(x_odd, block_bytes=256 * 1024))
    assert bool(jnp.array_equal(y_odd, x_odd))

    # Odd element count, tiny: single whole-array block.
    x_tiny = jnp.arange(91, dtype=jnp.float32).reshape(7, 13)
    y_tiny = jax.block_until_ready(_pallas_identity_copy(x_tiny))
    assert bool(jnp.array_equal(y_tiny, x_tiny))

    # Donated buffer: the copy is elided entirely (zero HBM traffic).
    y_donated = jax.block_until_ready(ft_forward(x, force_copy=True, donated=True))
    assert y_donated is x

    print("KERNEL_OK")
</pallas_src>

<mosaic_0001>
module attributes {stable_mosaic.version = 11 : i64} {
  func.func @_copy_kernel(%arg0: i32, %arg1: memref<2x1024xf32, #tpu.memory_space<vmem>>, %arg2: memref<2x1024xf32, #tpu.memory_space<vmem>>) attributes {dimension_semantics = [#tpu.dimension_semantics<parallel>], iteration_bounds = array<i64: 1>, scalar_prefetch = 0 : i64, scratch_operands = 0 : i64, tpu.core_type = #tpu.core_type<tc>, window_params = [{transform_indices = @transform_0, window_bounds = array<i64: 2, 1024>}, {transform_indices = @transform_1, window_bounds = array<i64: 2, 1024>}]} {
    %c0 = arith.constant 0 : index
    %c0_0 = arith.constant 0 : index
    %0 = vector.load %arg1[%c0, %c0_0] : memref<2x1024xf32, #tpu.memory_space<vmem>>, vector<2x1024xf32>
    %c0_1 = arith.constant 0 : index
    %c0_2 = arith.constant 0 : index
    %1 = vector.load %arg2[%c0_1, %c0_2] : memref<2x1024xf32, #tpu.memory_space<vmem>>, vector<2x1024xf32>
    tpu.vector_store %arg2[%c0_1, %c0_2], %0 {strides = array<i32>} : memref<2x1024xf32, #tpu.memory_space<vmem>>, vector<2x1024xf32>,
    return
  }
  func.func @transform_0(%arg0: i32) -> (i32, i32) {
    %c0_i32 = arith.constant 0 : i32
    %c0_i32_0 = arith.constant 0 : i32
    return %arg0, %c0_i32 : i32, i32
  }
  func.func @transform_1(%arg0: i32) -> (i32, i32) {
    %c0_i32 = arith.constant 0 : i32
    %c0_i32_0 = arith.constant 0 : i32
    return %arg0, %c0_i32 : i32, i32
  }
}

</mosaic_0001>

<llo_original>
// kernel: tpu_custom_call.1
$region0: #{tpu_custom_call.1}
  #allocation0 [shape = 'u32[]', space=smem, size = 0x4, offset = 0x4, fixed_abs, tag = 'smem constant byte address 0x4 - core index']
  #allocation1 [shape = 'u32[144,128]{1,0:T(1,128)}', space=vmem, size = 0x12000, scoped, tag = 'internal scratch']
  %s0 = inlined_call_operand.hbm [shape: f32[2,1024], index: 0, kind: input, shape index: {}]
  %s1 = inlined_call_operand.hbm [shape: f32[2,1024], index: 1, kind: output, shape index: {}]
  %s2 = sld [smem:[#allocation0]]
  $region18: #{tpu_custom_call.1} parent=0
    _
  %s4 = ssub.s32 1, %s2
  %s5 = scalar_select 0, %s4, %s2
  $region1: #{tpu_custom_call.1} parent=0
    #allocation2 [shape = 'u8[8192]{0}', space=vmem, size = 0x2000, scoped, tag = 'input window, operand 0, single buffered']
    #allocation3 [shape = 's32[1]{0}', space=sflag, size = 0x4, scoped, tag = 'scoped memory for tpu_custom_call.1']
    #allocation4 [shape = 's32[1]{0}', space=sflag, size = 0x4, scoped, tag = 'scoped memory for tpu_custom_call.1']
    #allocation5 [shape = 'u8[8192]{0}', space=vmem, size = 0x2000, scoped, tag = 'output window, operand 0, single buffered']
    %6 = vsyncpa [#allocation3], 0
    %7 = vsyncpa [#allocation4], 0
    // Predicated region
    $region2: #{tpu_custom_call.1} parent=1 // pred_check
      _
    $region3: #{tpu_custom_call.1} parent=1 // pred_check_branch
      %9 = sbr.rel (0) target = $region5
    $region4: #{tpu_custom_call.1} parent=1 // pred_region
      %s11 = ssub.s32 256, 256
      %12 = vsyncadd [#allocation3], %s11
      %s14 = sshll.u32 [#allocation2], 4
      %s15 = int_to_ptr.vmem [resolvable:$true] %s14
      %17 = dma.hbm_to_vmem [thread:$0]  %s0, 256, %s15, [#allocation3]
    $region5: #{tpu_custom_call.1} parent=1 // pred_fallthru
      _
    // Predicated region
    $region6: #{tpu_custom_call.1} parent=1 // pred_check
      _
    $region7: #{tpu_custom_call.1} parent=1 // pred_check_branch
      %19 = sbr.rel (0) target = $region9
    $region8: #{tpu_custom_call.1} parent=1 // pred_region
      %20 = dma.done [#allocation3], 256
    $region9: #{tpu_custom_call.1} parent=1 // pred_fallthru
      _
    %v21 = vld [vmem:[#allocation2] sm:$0xff]
    %v22 = vld [vmem:[#allocation2 + $0x8] sm:$0xff]
    %23 = vst [vmem:[#allocation5] sm:$0xff] %v21
    %24 = vst [vmem:[#allocation5 + $0x8] sm:$0xff] %v22
    // Predicated region
    $region10: #{tpu_custom_call.1} parent=1 // pred_check
      _
    $region11: #{tpu_custom_call.1} parent=1 // pred_check_branch
      %26 = sbr.rel (0) target = $region13
    $region12: #{tpu_custom_call.1} parent=1 // pred_region
      %s28 = ssub.s32 256, 256
      %29 = vsyncadd [#allocation4], %s28
      %s31 = sshll.u32 [#allocation5], 4
      %s32 = int_to_ptr.vmem [resolvable:$true] %s31
      %34 = dma.vmem_to_hbm [thread:$0]  %s32, 256, %s1, [#allocation4]
    $region13: #{tpu_custom_call.1} parent=1 // pred_fallthru
      _
    // Predicated region
    $region14: #{tpu_custom_call.1} parent=1 // pred_check
      _
    $region15: #{tpu_custom_call.1} parent=1 // pred_check_branch
      %36 = sbr.rel (0) target = $region17
    $region16: #{tpu_custom_call.1} parent=1 // pred_region
      %37 = dma.done [#allocation4], 256
    $region17: #{tpu_custom_call.1} parent=1 // pred_fallthru
      _
    %38 = vsyncpa [#allocation3], 1
    %39 = vsyncpa [#allocation4], 1

</llo_original>
